<compile_context>
chip_gen: v5e
topology: v5e:2x2
jax: 0.10.0
libtpu: 0.0.40
codegen_flags: <defaults>
</compile_context>

<pallas_src>
import jax
import jax.numpy as jnp
from jax import lax
from jax.experimental import pallas as pl
from jax.experimental.pallas import tpu as pltpu


def _get_freq_weights(h: int, w: int) -> jnp.ndarray:
    """Same math as HighFreqMSELoss.get_freq_weights (sagittal plane -> (H, W))."""
    cy, cx = (h - 1) / 2.0, (w - 1) / 2.0
    y = jnp.arange(h, dtype=jnp.float32)[:, None]   # (H, 1)
    x = jnp.arange(w, dtype=jnp.float32)[None, :]   # (1, W)
    freq_magnitude = jnp.sqrt((x - cx) ** 2 + (y - cy) ** 2)
    max_distance = jnp.sqrt(jnp.float32((h - 1) ** 2 + (w - 1) ** 2)) / 2.0
    freq_magnitude = freq_magnitude / max_distance
    return freq_magnitude ** 2                      # (H, W)


def _round_up(a: int, b: int) -> int:
    return -(-a // b) * b


def _round_down(a: int, b: int) -> int:
    return (a // b) * b


def _make_kernel(rows, feat, row_tile, col_tile, row_steps,
                 need_row_mask, need_col_mask):
    """Kernel closure over static tiling parameters (all Python ints)."""

    def kernel(x_ref, y_ref, w_ref, o_ref, acc_ref):
        # x_ref, y_ref: (row_tile, col_tile) block (native dtype).
        # w_ref:        (1, col_tile) frequency weights, pre-scaled by 1/total.
        # o_ref:        (1, 8, 128) per-core output slab (scalar partial broadcast).
        # acc_ref:      (row_tile, col_tile) f32 elementwise accumulator.
        i = pl.program_id(1)
        j = pl.program_id(2)

        @pl.when((i == 0) & (j == 0))
        def _():
            acc_ref[...] = jnp.zeros_like(acc_ref)

        d = x_ref[...].astype(jnp.float32) - y_ref[...].astype(jnp.float32)
        contrib = (d * d) * w_ref[...]              # (1, col_tile) broadcasts over rows

        # Zero contributions from out-of-bounds rows/cols of ragged edge blocks
        # (only emitted when the shape actually needs it).
        mask = None
        if need_row_mask:
            r0 = (pl.program_id(0) * row_steps + i) * row_tile
            ridx = r0 + lax.broadcasted_iota(jnp.int32, (row_tile, col_tile), 0)
            mask = ridx < rows
        if need_col_mask:
            c0 = j * col_tile
            cidx = c0 + lax.broadcasted_iota(jnp.int32, (row_tile, col_tile), 1)
            cmask = cidx < feat
            mask = cmask if mask is None else (mask & cmask)
        if mask is not None:
            contrib = jnp.where(mask, contrib, 0.0)

        acc_ref[...] += contrib                     # pure VPU, no per-step reduce

        @pl.when((i == pl.num_programs(1) - 1) & (j == pl.num_programs(2) - 1))
        def _():
            partial = jnp.sum(acc_ref[...])         # single XLU reduce per core
            o_ref[...] = jnp.full(o_ref.shape, partial, jnp.float32)

    return kernel


def high_freq_mse_loss(inputs: jnp.ndarray, targets: jnp.ndarray) -> jnp.ndarray:
    """Mean of square(inputs - targets) * freq_weights (sagittal plane, mean)."""
    assert inputs.shape == targets.shape
    n, c, h, w, z = inputs.shape
    rows = n * c
    feat = h * w * z
    total = rows * feat

    # Free contiguous reshapes; inputs stay in their native dtype.
    x = inputs.reshape(rows, feat)
    y = targets.reshape(rows, feat)

    # (H, W) weights broadcast along Z into a lane-dense slab, fused with 1/total.
    fw = _get_freq_weights(h, w)
    w_slab = (jnp.broadcast_to(fw[:, :, None], (h, w, z)).reshape(1, feat)
              / jnp.float32(total))

    # Tile selection: <= 512K elements per input block (2 MiB at f32).  With
    # double-buffered inputs + the f32 accumulator this stays < ~11 MiB, safe on
    # v5e's 16 MiB default scoped VMEM (and v6e/v7x).
    itemsize = jnp.dtype(inputs.dtype).itemsize
    max_block_elems = 512 * 1024

    # Column tiling: keep the full feature width resident when it fits with at
    # least 8 rows; otherwise lane-aligned chunks (ragged tail masked in-kernel).
    if feat * 8 <= max_block_elems:
        col_tile, col_steps = feat, 1
    else:
        col_tile = max(128, _round_down(max_block_elems // 8, 128))
        col_steps = pl.cdiv(feat, col_tile)

    # Row tiling: full-dim block when small (always legal), else multiples of 8.
    row_tile_max = max(8, _round_down(max_block_elems // col_tile, 8))
    if rows <= row_tile_max:
        row_tile, row_blocks = rows, 1
    else:
        row_tile = row_tile_max
        row_blocks = pl.cdiv(rows, row_tile)

    # Optional megacore split over row blocks (2 TCs on v7x; on v5e/v6e the
    # "parallel" axis simply serializes).  Only when it divides evenly so no
    # grid step maps to a fully out-of-bounds block.
    if row_blocks >= 2 and row_blocks % 2 == 0:
        num_cores, row_steps = 2, row_blocks // 2
    else:
        num_cores, row_steps = 1, row_blocks

    need_row_mask = row_blocks * row_tile > rows
    need_col_mask = col_steps * col_tile > feat

    kernel = _make_kernel(rows, feat, row_tile, col_tile, row_steps,
                          need_row_mask, need_col_mask)

    out = pl.pallas_call(
        kernel,
        out_shape=jax.ShapeDtypeStruct((num_cores, 8, 128), jnp.float32),
        grid_spec=pltpu.PrefetchScalarGridSpec(
            num_scalar_prefetch=0,
            grid=(num_cores, row_steps, col_steps),
            in_specs=[
                pl.BlockSpec((row_tile, col_tile),
                             lambda p, i, j: (p * row_steps + i, j)),
                pl.BlockSpec((row_tile, col_tile),
                             lambda p, i, j: (p * row_steps + i, j)),
                pl.BlockSpec((1, col_tile), lambda p, i, j: (0, j)),
            ],
            out_specs=pl.BlockSpec((1, 8, 128), lambda p, i, j: (p, 0, 0)),
            scratch_shapes=[pltpu.VMEM((row_tile, col_tile), jnp.float32)],
        ),
        compiler_params=pltpu.CompilerParams(
            dimension_semantics=("parallel", "arbitrary", "arbitrary")),
    )(x, y, w_slab)

    # Combine the per-core partial sums (weights already carry the 1/total).
    return jnp.sum(out[:, 0, 0])


def _reference(inputs, targets):
    """Pure-JAX reference replicating the PyTorch forward (sagittal, mean)."""
    diff = jnp.square(inputs.astype(jnp.float32) - targets.astype(jnp.float32))
    h, w = diff.shape[-3], diff.shape[-2]
    fw = _get_freq_weights(h, w)[None, None, :, :, None]
    return jnp.mean(diff * fw)


# TODO(synk): only the default (reduction='mean', fourier_plane_enc='sagittal')
# forward path is implemented; 'none' reduction and coronal/axial planes are not.

if __name__ == "__main__":
    key = jax.random.PRNGKey(0)
    k1, k2 = jax.random.split(key)
    # Small 5-D shapes: (batch, channel, H, W, Z)
    shape = (2, 4, 16, 16, 8)
    inputs = jax.random.normal(k1, shape, dtype=jnp.float32)
    targets = jax.random.normal(k2, shape, dtype=jnp.float32)

    loss = jax.block_until_ready(high_freq_mse_loss(inputs, targets))
    ref = jax.block_until_ready(_reference(inputs, targets))
    assert jnp.allclose(loss, ref, rtol=1e-5, atol=1e-6), (loss, ref)
    print("KERNEL_OK")
</pallas_src>

<mosaic_0001>
module attributes {stable_mosaic.version = 11 : i64} {
  func.func @kernel(%arg0: i32, %arg1: i32, %arg2: i32, %arg3: memref<8x2048xf32, #tpu.memory_space<vmem>>, %arg4: memref<8x2048xf32, #tpu.memory_space<vmem>>, %arg5: memref<1x2048xf32, #tpu.memory_space<vmem>>, %arg6: memref<1x8x128xf32, #tpu.memory_space<vmem>>, %arg7: memref<8x2048xf32, #tpu.memory_space<vmem>>) attributes {dimension_semantics = [#tpu.dimension_semantics<parallel>, #tpu.dimension_semantics<arbitrary>, #tpu.dimension_semantics<arbitrary>], iteration_bounds = array<i64: 1, 1, 1>, scalar_prefetch = 0 : i64, scratch_operands = 1 : i64, tpu.core_type = #tpu.core_type<tc>, window_params = [{transform_indices = @transform_0, window_bounds = array<i64: 8, 2048>}, {transform_indices = @transform_1, window_bounds = array<i64: 8, 2048>}, {transform_indices = @transform_2, window_bounds = array<i64: 1, 2048>}, {transform_indices = @transform_3, window_bounds = array<i64: 1, 8, 128>}]} {
    %c0_i32 = arith.constant 0 : i32
    %0 = arith.cmpi eq, %arg1, %c0_i32 : i32
    %c0_i32_0 = arith.constant 0 : i32
    %1 = arith.cmpi eq, %arg2, %c0_i32_0 : i32
    %2 = arith.andi %0, %1 : i1
    %3 = arith.extui %2 : i1 to i32
    %c0_i32_1 = arith.constant 0 : i32
    %4 = arith.cmpi ne, %3, %c0_i32_1 : i32
    scf.if %4 {
      %cst = arith.constant 0.000000e+00 : f32
      %20 = vector.broadcast %cst : f32 to vector<8x2048xf32>
      %c0_14 = arith.constant 0 : index
      %c0_15 = arith.constant 0 : index
      %21 = vector.load %arg7[%c0_14, %c0_15] : memref<8x2048xf32, #tpu.memory_space<vmem>>, vector<8x2048xf32>
      tpu.vector_store %arg7[%c0_14, %c0_15], %20 {strides = array<i32>} : memref<8x2048xf32, #tpu.memory_space<vmem>>, vector<8x2048xf32>,
    } else {
    }
    %c0 = arith.constant 0 : index
    %c0_2 = arith.constant 0 : index
    %5 = vector.load %arg3[%c0, %c0_2] : memref<8x2048xf32, #tpu.memory_space<vmem>>, vector<8x2048xf32>
    %c0_3 = arith.constant 0 : index
    %c0_4 = arith.constant 0 : index
    %6 = vector.load %arg4[%c0_3, %c0_4] : memref<8x2048xf32, #tpu.memory_space<vmem>>, vector<8x2048xf32>
    %7 = arith.subf %5, %6 : vector<8x2048xf32>
    %8 = arith.mulf %7, %7 : vector<8x2048xf32>
    %c0_5 = arith.constant 0 : index
    %c0_6 = arith.constant 0 : index
    %9 = vector.load %arg5[%c0_5, %c0_6] : memref<1x2048xf32, #tpu.memory_space<vmem>>, vector<1x2048xf32>
    %10 = vector.broadcast %9 : vector<1x2048xf32> to vector<8x2048xf32>
    %11 = arith.mulf %8, %10 : vector<8x2048xf32>
    %c0_7 = arith.constant 0 : index
    %c0_8 = arith.constant 0 : index
    %12 = vector.load %arg7[%c0_7, %c0_8] : memref<8x2048xf32, #tpu.memory_space<vmem>>, vector<8x2048xf32>
    %13 = arith.addf %12, %11 : vector<8x2048xf32>
    %c0_9 = arith.constant 0 : index
    %c0_10 = arith.constant 0 : index
    %14 = vector.load %arg7[%c0_9, %c0_10] : memref<8x2048xf32, #tpu.memory_space<vmem>>, vector<8x2048xf32>
    tpu.vector_store %arg7[%c0_9, %c0_10], %13 {strides = array<i32>} : memref<8x2048xf32, #tpu.memory_space<vmem>>, vector<8x2048xf32>,
    %c0_i32_11 = arith.constant 0 : i32
    %15 = arith.cmpi eq, %arg1, %c0_i32_11 : i32
    %c0_i32_12 = arith.constant 0 : i32
    %16 = arith.cmpi eq, %arg2, %c0_i32_12 : i32
    %17 = arith.andi %15, %16 : i1
    %18 = arith.extui %17 : i1 to i32
    %c0_i32_13 = arith.constant 0 : i32
    %19 = arith.cmpi ne, %18, %c0_i32_13 : i32
    scf.if %19 {
      %c0_14 = arith.constant 0 : index
      %c0_15 = arith.constant 0 : index
      %20 = vector.load %arg7[%c0_14, %c0_15] : memref<8x2048xf32, #tpu.memory_space<vmem>>, vector<8x2048xf32>
      %21 = vector.shape_cast %20 : vector<8x2048xf32> to vector<1x8x2048xf32>
      %cst = arith.constant dense<0.000000e+00> : vector<1xf32>
      %22 = vector.multi_reduction <add>, %21, %cst [1, 2] : vector<1x8x2048xf32> to vector<1xf32>
      %23 = vector.shape_cast %22 : vector<1xf32> to vector<1x1x1xf32>
      %24 = vector.extract %23[0, 0, 0] : f32 from vector<1x1x1xf32>
      %25 = vector.broadcast %24 : f32 to vector<1x8x128xf32>
      %c0_16 = arith.constant 0 : index
      %c0_17 = arith.constant 0 : index
      %c0_18 = arith.constant 0 : index
      %26 = vector.load %arg6[%c0_16, %c0_17, %c0_18] : memref<1x8x128xf32, #tpu.memory_space<vmem>>, vector<1x8x128xf32>
      tpu.vector_store %arg6[%c0_16, %c0_17, %c0_18], %25 {strides = array<i32>} : memref<1x8x128xf32, #tpu.memory_space<vmem>>, vector<1x8x128xf32>,
    } else {
    }
    return
  }
  func.func @transform_0(%arg0: i32, %arg1: i32, %arg2: i32) -> (i32, i32) {
    %c1_i32 = arith.constant 1 : i32
    %0 = arith.muli %arg0, %c1_i32 : i32
    %1 = arith.addi %0, %arg1 : i32
    %c0_i32 = arith.constant 0 : i32
    return %1, %arg2 : i32, i32
  }
  func.func @transform_1(%arg0: i32, %arg1: i32, %arg2: i32) -> (i32, i32) {
    %c1_i32 = arith.constant 1 : i32
    %0 = arith.muli %arg0, %c1_i32 : i32
    %1 = arith.addi %0, %arg1 : i32
    %c0_i32 = arith.constant 0 : i32
    return %1, %arg2 : i32, i32
  }
  func.func @transform_2(%arg0: i32, %arg1: i32, %arg2: i32) -> (i32, i32) {
    %c0_i32 = arith.constant 0 : i32
    %c0_i32_0 = arith.constant 0 : i32
    return %c0_i32, %arg2 : i32, i32
  }
  func.func @transform_3(%arg0: i32, %arg1: i32, %arg2: i32) -> (i32, i32, i32) {
    %c0_i32 = arith.constant 0 : i32
    %c0_i32_0 = arith.constant 0 : i32
    %c0_i32_1 = arith.constant 0 : i32
    return %arg0, %c0_i32, %c0_i32_0 : i32, i32, i32
  }
}

</mosaic_0001>

<llo_original>
// kernel: tpu_custom_call.1
$region0: #{tpu_custom_call.1}
  #allocation0 [shape = 'u32[]', space=smem, size = 0x4, offset = 0x4, fixed_abs, tag = 'smem constant byte address 0x4 - core index']
  #allocation1 [shape = 'u32[72,128]{1,0:T(1,128)}', space=vmem, size = 0x9000, scoped, tag = 'internal scratch']
  #allocation2 [shape = 'f32[8,2048]{1,0:T(8,128)}', space=vmem, size = 0x10000, scoped, tag = 'scratch operand']
  %s0 = inlined_call_operand.hbm [shape: f32[8,2048], index: 0, kind: input, shape index: {}]
  %s1 = inlined_call_operand.hbm [shape: f32[8,2048], index: 1, kind: input, shape index: {}]
  %s2 = inlined_call_operand.hbm [shape: f32[1,2048], index: 2, kind: input, shape index: {}]
  %s3 = inlined_call_operand.hbm [shape: f32[1,8,128], index: 3, kind: output, shape index: {}]
  %s4 = sld [smem:[#allocation0]]
  $region42: #{tpu_custom_call.1} parent=0
    _
  %s6 = ssub.s32 1, %s4
  %s7 = scalar_select 0, %s6, %s4
  $region1: #{tpu_custom_call.1} parent=0
    #allocation3 [shape = 'u8[65536]{0}', space=vmem, size = 0x10000, scoped, tag = 'input window, operand 0, single buffered']
    #allocation4 [shape = 's32[1]{0}', space=sflag, size = 0x4, scoped, tag = 'scoped memory for tpu_custom_call.1']
    #allocation5 [shape = 's32[1]{0}', space=sflag, size = 0x4, scoped, tag = 'scoped memory for tpu_custom_call.1']
    #allocation6 [shape = 'u8[65536]{0}', space=vmem, size = 0x10000, scoped, tag = 'input window, operand 1, single buffered']
    #allocation7 [shape = 's32[1]{0}', space=sflag, size = 0x4, scoped, tag = 'scoped memory for tpu_custom_call.1']
    #allocation8 [shape = 'u8[8192]{0}', space=vmem, size = 0x2000, scoped, tag = 'input window, operand 2, single buffered']
    #allocation9 [shape = 'u8[4096]{0}', space=vmem, size = 0x1000, scoped, tag = 'output window, operand 0, single buffered']
    %8 = vsyncpa [#allocation4], 0
    %9 = vsyncpa [#allocation7], 0
    %10 = vsyncpa [#allocation5], 0
    // Predicated region
    $region2: #{tpu_custom_call.1} parent=1 // pred_check
      _
    $region3: #{tpu_custom_call.1} parent=1 // pred_check_branch
      %12 = sbr.rel (0) target = $region5
    $region4: #{tpu_custom_call.1} parent=1 // pred_region
      %s13 = sadd.s32 0, 0
      %15 = vsyncadd [#allocation4], 0
      %s16 = smul.addr %s13, 16
      %s17 = smul.addr %s16, 8
      %s18 = scalar_lea.hbm %s0, %s17
      %s20 = sshll.u32 %s18, 4
      %s21 = int_to_ptr.hbm [resolvable:$true] %s20
      %s22 = sshll.u32 [#allocation3], 4
      %s23 = int_to_ptr.vmem [resolvable:$true] %s22
      %25 = dma.hbm_to_vmem [thread:$0]  %s21, 2048, %s23, [#allocation4]
    $region5: #{tpu_custom_call.1} parent=1 // pred_fallthru
      _
    // Predicated region
    $region6: #{tpu_custom_call.1} parent=1 // pred_check
      _
    $region7: #{tpu_custom_call.1} parent=1 // pred_check_branch
      %27 = sbr.rel (0) target = $region9
    $region8: #{tpu_custom_call.1} parent=1 // pred_region
      %s28 = sadd.s32 0, 0
      %30 = vsyncadd [#allocation7], 0
      %s31 = smul.addr %s28, 16
      %s32 = smul.addr %s31, 8
      %s33 = scalar_lea.hbm %s1, %s32
      %s35 = sshll.u32 %s33, 4
      %s36 = int_to_ptr.hbm [resolvable:$true] %s35
      %s37 = sshll.u32 [#allocation6], 4
      %s38 = int_to_ptr.vmem [resolvable:$true] %s37
      %40 = dma.hbm_to_vmem [thread:$0]  %s36, 2048, %s38, [#allocation7]
    $region9: #{tpu_custom_call.1} parent=1 // pred_fallthru
      _
    // Predicated region
    $region10: #{tpu_custom_call.1} parent=1 // pred_check
      _
    $region11: #{tpu_custom_call.1} parent=1 // pred_check_branch
      %42 = sbr.rel (0) target = $region13
    $region12: #{tpu_custom_call.1} parent=1 // pred_region
      %44 = vsyncadd [#allocation7], 0
      %s46 = sshll.u32 %s2, 4
      %s47 = int_to_ptr.hbm [resolvable:$true] %s46
      %s48 = sshll.u32 [#allocation8], 4
      %s49 = int_to_ptr.vmem [resolvable:$true] %s48
      %51 = dma.hbm_to_vmem [thread:$0]  %s47, 256, %s49, [#allocation7]
    $region13: #{tpu_custom_call.1} parent=1 // pred_fallthru
      _
    // Predicated region
    $region14: #{tpu_custom_call.1} parent=1 // pred_check
      _
    $region15: #{tpu_custom_call.1} parent=1 // pred_check_branch
      %53 = sbr.rel (0) target = $region17
    $region16: #{tpu_custom_call.1} parent=1 // pred_region
      %55 = dma.done [#allocation4], 2048
    $region17: #{tpu_custom_call.1} parent=1 // pred_fallthru
      _
    // Predicated region
    $region18: #{tpu_custom_call.1} parent=1 // pred_check
      _
    $region19: #{tpu_custom_call.1} parent=1 // pred_check_branch
      %57 = sbr.rel (0) target = $region21
    $region20: #{tpu_custom_call.1} parent=1 // pred_region
      %59 = dma.done [#allocation7], 2048
    $region21: #{tpu_custom_call.1} parent=1 // pred_fallthru
      _
    // Predicated region
    $region22: #{tpu_custom_call.1} parent=1 // pred_check
      _
    $region23: #{tpu_custom_call.1} parent=1 // pred_check_branch
      %61 = sbr.rel (0) target = $region25
    $region24: #{tpu_custom_call.1} parent=1 // pred_region
      %63 = dma.done [#allocation7], 256
    $region25: #{tpu_custom_call.1} parent=1 // pred_fallthru
      _
    %s64 = sadd.s32 0, 0
    %s65 = sadd.s32 0, 0
    %p66 = scmp.eq.s32.totalorder 0, 0
    %p67 = scmp.eq.s32.totalorder 0, 0
    %p68 = pnand %p66, %p67
    %p69 = pneg %p68
    // Predicated region
    $region26: #{tpu_custom_call.1} parent=1 // pred_check
      _
    $region27: #{tpu_custom_call.1} parent=1 // pred_check_branch
      %71 = sbr.rel (%p68) target = $region29
    $region28: #{tpu_custom_call.1} parent=1 // pred_region
      %72 = vst [vmem:[#allocation2] sm:$0xff] 0.0
      %73 = vst [vmem:[#allocation2 + $0x8] sm:$0xff] 0.0
      %74 = vst [vmem:[#allocation2 + $0x10] sm:$0xff] 0.0
      %75 = vst [vmem:[#allocation2 + $0x18] sm:$0xff] 0.0
      %76 = vst [vmem:[#allocation2 + $0x20] sm:$0xff] 0.0
      %77 = vst [vmem:[#allocation2 + $0x28] sm:$0xff] 0.0
      %78 = vst [vmem:[#allocation2 + $0x30] sm:$0xff] 0.0
      %79 = vst [vmem:[#allocation2 + $0x38] sm:$0xff] 0.0
      %80 = vst [vmem:[#allocation2 + $0x40] sm:$0xff] 0.0
      %81 = vst [vmem:[#allocation2 + $0x48] sm:$0xff] 0.0
      %82 = vst [vmem:[#allocation2 + $0x50] sm:$0xff] 0.0
      %83 = vst [vmem:[#allocation2 + $0x58] sm:$0xff] 0.0
      %84 = vst [vmem:[#allocation2 + $0x60] sm:$0xff] 0.0
      %85 = vst [vmem:[#allocation2 + $0x68] sm:$0xff] 0.0
      %86 = vst [vmem:[#allocation2 + $0x70] sm:$0xff] 0.0
      %87 = vst [vmem:[#allocation2 + $0x78] sm:$0xff] 0.0
    $region29: #{tpu_custom_call.1} parent=1 // pred_fallthru
      _
    %v88 = vld [vmem:[#allocation3] sm:$0xff]
    %v89 = vld [vmem:[#allocation3 + $0x8] sm:$0xff]
    %v90 = vld [vmem:[#allocation3 + $0x10] sm:$0xff]
    %v91 = vld [vmem:[#allocation3 + $0x18] sm:$0xff]
    %v92 = vld [vmem:[#allocation3 + $0x20] sm:$0xff]
    %v93 = vld [vmem:[#allocation3 + $0x28] sm:$0xff]
    %v94 = vld [vmem:[#allocation3 + $0x30] sm:$0xff]
    %v95 = vld [vmem:[#allocation3 + $0x38] sm:$0xff]
    %v96 = vld [vmem:[#allocation3 + $0x40] sm:$0xff]
    %v97 = vld [vmem:[#allocation3 + $0x48] sm:$0xff]
    %v98 = vld [vmem:[#allocation3 + $0x50] sm:$0xff]
    %v99 = vld [vmem:[#allocation3 + $0x58] sm:$0xff]
    %v100 = vld [vmem:[#allocation3 + $0x60] sm:$0xff]
    %v101 = vld [vmem:[#allocation3 + $0x68] sm:$0xff]
    %v102 = vld [vmem:[#allocation3 + $0x70] sm:$0xff]
    %v103 = vld [vmem:[#allocation3 + $0x78] sm:$0xff]
    %v104 = vld [vmem:[#allocation6] sm:$0xff]
    %v105 = vld [vmem:[#allocation6 + $0x8] sm:$0xff]
    %v106 = vld [vmem:[#allocation6 + $0x10] sm:$0xff]
    %v107 = vld [vmem:[#allocation6 + $0x18] sm:$0xff]
    %v108 = vld [vmem:[#allocation6 + $0x20] sm:$0xff]
    %v109 = vld [vmem:[#allocation6 + $0x28] sm:$0xff]
    %v110 = vld [vmem:[#allocation6 + $0x30] sm:$0xff]
    %v111 = vld [vmem:[#allocation6 + $0x38] sm:$0xff]
    %v112 = vld [vmem:[#allocation6 + $0x40] sm:$0xff]
    %v113 = vld [vmem:[#allocation6 + $0x48] sm:$0xff]
    %v114 = vld [vmem:[#allocation6 + $0x50] sm:$0xff]
    %v115 = vld [vmem:[#allocation6 + $0x58] sm:$0xff]
    %v116 = vld [vmem:[#allocation6 + $0x60] sm:$0xff]
    %v117 = vld [vmem:[#allocation6 + $0x68] sm:$0xff]
    %v118 = vld [vmem:[#allocation6 + $0x70] sm:$0xff]
    %v119 = vld [vmem:[#allocation6 + $0x78] sm:$0xff]
    %v120 = vsub.f32 %v88, %v104
    %v121 = vsub.f32 %v89, %v105
    %v122 = vsub.f32 %v90, %v106
    %v123 = vsub.f32 %v91, %v107
    %v124 = vsub.f32 %v92, %v108
    %v125 = vsub.f32 %v93, %v109
    %v126 = vsub.f32 %v94, %v110
    %v127 = vsub.f32 %v95, %v111
    %v128 = vsub.f32 %v96, %v112
    %v129 = vsub.f32 %v97, %v113
    %v130 = vsub.f32 %v98, %v114
    %v131 = vsub.f32 %v99, %v115
    %v132 = vsub.f32 %v100, %v116
    %v133 = vsub.f32 %v101, %v117
    %v134 = vsub.f32 %v102, %v118
    %v135 = vsub.f32 %v103, %v119
    %v136 = vmul.f32 %v120, %v120
    %v137 = vmul.f32 %v121, %v121
    %v138 = vmul.f32 %v122, %v122
    %v139 = vmul.f32 %v123, %v123
    %v140 = vmul.f32 %v124, %v124
    %v141 = vmul.f32 %v125, %v125
    %v142 = vmul.f32 %v126, %v126
    %v143 = vmul.f32 %v127, %v127
    %v144 = vmul.f32 %v128, %v128
    %v145 = vmul.f32 %v129, %v129
    %v146 = vmul.f32 %v130, %v130
    %v147 = vmul.f32 %v131, %v131
    %v148 = vmul.f32 %v132, %v132
    %v149 = vmul.f32 %v133, %v133
    %v150 = vmul.f32 %v134, %v134
    %v151 = vmul.f32 %v135, %v135
    %v152 = vld [vmem:[#allocation8] sm:$0xff]
    %v153 = vld [vmem:[#allocation8 + $0x8] sm:$0xff]
    %v156 = vperm.slane %v152, 0
    %v157 = vperm.slane %v152, 1
    %v158 = vperm.slane %v152, 2
    %v159 = vperm.slane %v152, 3
    %v160 = vperm.slane %v152, 4
    %v161 = vperm.slane %v152, 5
    %v162 = vperm.slane %v152, 6
    %v163 = vperm.slane %v152, 7
    %v164 = vperm.slane %v153, 0
    %v165 = vperm.slane %v153, 1
    %v166 = vperm.slane %v153, 2
    %v167 = vperm.slane %v153, 3
    %v168 = vperm.slane %v153, 4
    %v169 = vperm.slane %v153, 5
    %v170 = vperm.slane %v153, 6
    %v171 = vperm.slane %v153, 7
    %v188 = vmul.f32 %v136, %v156
    %v189 = vmul.f32 %v137, %v157
    %v190 = vmul.f32 %v138, %v158
    %v191 = vmul.f32 %v139, %v159
    %v192 = vmul.f32 %v140, %v160
    %v193 = vmul.f32 %v141, %v161
    %v194 = vmul.f32 %v142, %v162
    %v195 = vmul.f32 %v143, %v163
    %v196 = vmul.f32 %v144, %v164
    %v197 = vmul.f32 %v145, %v165
    %v198 = vmul.f32 %v146, %v166
    %v199 = vmul.f32 %v147, %v167
    %v200 = vmul.f32 %v148, %v168
    %v201 = vmul.f32 %v149, %v169
    %v202 = vmul.f32 %v150, %v170
    %v203 = vmul.f32 %v151, %v171
    %v204 = vld [vmem:[#allocation2] sm:$0xff]
    %v205 = vld [vmem:[#allocation2 + $0x8] sm:$0xff]
    %v206 = vld [vmem:[#allocation2 + $0x10] sm:$0xff]
    %v207 = vld [vmem:[#allocation2 + $0x18] sm:$0xff]
    %v208 = vld [vmem:[#allocation2 + $0x20] sm:$0xff]
    %v209 = vld [vmem:[#allocation2 + $0x28] sm:$0xff]
    %v210 = vld [vmem:[#allocation2 + $0x30] sm:$0xff]
    %v211 = vld [vmem:[#allocation2 + $0x38] sm:$0xff]
    %v212 = vld [vmem:[#allocation2 + $0x40] sm:$0xff]
    %v213 = vld [vmem:[#allocation2 + $0x48] sm:$0xff]
    %v214 = vld [vmem:[#allocation2 + $0x50] sm:$0xff]
    %v215 = vld [vmem:[#allocation2 + $0x58] sm:$0xff]
    %v216 = vld [vmem:[#allocation2 + $0x60] sm:$0xff]
    %v217 = vld [vmem:[#allocation2 + $0x68] sm:$0xff]
    %v218 = vld [vmem:[#allocation2 + $0x70] sm:$0xff]
    %v219 = vld [vmem:[#allocation2 + $0x78] sm:$0xff]
    %v220 = vadd.f32 %v204, %v188
    %v221 = vadd.f32 %v205, %v189
    %v222 = vadd.f32 %v206, %v190
    %v223 = vadd.f32 %v207, %v191
    %v224 = vadd.f32 %v208, %v192
    %v225 = vadd.f32 %v209, %v193
    %v226 = vadd.f32 %v210, %v194
    %v227 = vadd.f32 %v211, %v195
    %v228 = vadd.f32 %v212, %v196
    %v229 = vadd.f32 %v213, %v197
    %v230 = vadd.f32 %v214, %v198
    %v231 = vadd.f32 %v215, %v199
    %v232 = vadd.f32 %v216, %v200
    %v233 = vadd.f32 %v217, %v201
    %v234 = vadd.f32 %v218, %v202
    %v235 = vadd.f32 %v219, %v203
    %236 = vst [vmem:[#allocation2] sm:$0xff] %v220
    %237 = vst [vmem:[#allocation2 + $0x8] sm:$0xff] %v221
    %238 = vst [vmem:[#allocation2 + $0x10] sm:$0xff] %v222
    %239 = vst [vmem:[#allocation2 + $0x18] sm:$0xff] %v223
    %240 = vst [vmem:[#allocation2 + $0x20] sm:$0xff] %v224
    %241 = vst [vmem:[#allocation2 + $0x28] sm:$0xff] %v225
    %242 = vst [vmem:[#allocation2 + $0x30] sm:$0xff] %v226
    %243 = vst [vmem:[#allocation2 + $0x38] sm:$0xff] %v227
    %244 = vst [vmem:[#allocation2 + $0x40] sm:$0xff] %v228
    %245 = vst [vmem:[#allocation2 + $0x48] sm:$0xff] %v229
    %246 = vst [vmem:[#allocation2 + $0x50] sm:$0xff] %v230
    %247 = vst [vmem:[#allocation2 + $0x58] sm:$0xff] %v231
    %248 = vst [vmem:[#allocation2 + $0x60] sm:$0xff] %v232
    %249 = vst [vmem:[#allocation2 + $0x68] sm:$0xff] %v233
    %250 = vst [vmem:[#allocation2 + $0x70] sm:$0xff] %v234
    %251 = vst [vmem:[#allocation2 + $0x78] sm:$0xff] %v235
    // Predicated region
    $region30: #{tpu_custom_call.1} parent=1 // pred_check
      _
    $region31: #{tpu_custom_call.1} parent=1 // pred_check_branch
      %253 = sbr.rel (%p68) target = $region33
    $region32: #{tpu_custom_call.1} parent=1 // pred_region
      %v254 = vld [vmem:[#allocation2] sm:$0xff]
      %v255 = vld [vmem:[#allocation2 + $0x8] sm:$0xff]
      %v256 = vld [vmem:[#allocation2 + $0x10] sm:$0xff]
      %v257 = vld [vmem:[#allocation2 + $0x18] sm:$0xff]
      %v258 = vld [vmem:[#allocation2 + $0x20] sm:$0xff]
      %v259 = vld [vmem:[#allocation2 + $0x28] sm:$0xff]
      %v260 = vld [vmem:[#allocation2 + $0x30] sm:$0xff]
      %v261 = vld [vmem:[#allocation2 + $0x38] sm:$0xff]
      %v262 = vld [vmem:[#allocation2 + $0x40] sm:$0xff]
      %v263 = vld [vmem:[#allocation2 + $0x48] sm:$0xff]
      %v264 = vld [vmem:[#allocation2 + $0x50] sm:$0xff]
      %v265 = vld [vmem:[#allocation2 + $0x58] sm:$0xff]
      %v266 = vld [vmem:[#allocation2 + $0x60] sm:$0xff]
      %v267 = vld [vmem:[#allocation2 + $0x68] sm:$0xff]
      %v268 = vld [vmem:[#allocation2 + $0x70] sm:$0xff]
      %v269 = vld [vmem:[#allocation2 + $0x78] sm:$0xff]
      %v270 = vadd.f32 %v254, %v255
      %v271 = vadd.f32 %v270, %v256
      %v272 = vadd.f32 %v271, %v257
      %v273 = vadd.f32 %v272, %v258
      %v274 = vadd.f32 %v273, %v259
      %v275 = vadd.f32 %v274, %v260
      %v276 = vadd.f32 %v275, %v261
      %v277 = vadd.f32 %v276, %v262
      %v278 = vadd.f32 %v277, %v263
      %v279 = vadd.f32 %v278, %v264
      %v280 = vadd.f32 %v279, %v265
      %v281 = vadd.f32 %v280, %v266
      %v282 = vadd.f32 %v281, %v267
      %v283 = vadd.f32 %v282, %v268
      %v284 = vadd.f32 %v283, %v269
      %285 = vadd.xlane.f32.xlu0 %v284
      %v286 = vpop.xlane.xlu0 %285
      %v287 = vrot.slane %v286, 4
      %v288 = vadd.f32 %v286, %v287
      %v289 = vrot.slane %v288, 2
      %v290 = vadd.f32 %v288, %v289
      %v291 = vrot.slane %v290, 1
      %v292 = vadd.f32 %v290, %v291
      %s293 = vtos %v292
      %v294 = vstv %s293
      %295 = vst [vmem:[#allocation9] sm:$0xff] %v294
    $region33: #{tpu_custom_call.1} parent=1 // pred_fallthru
      _
    // Predicated region
    $region34: #{tpu_custom_call.1} parent=1 // pred_check
      _
    $region35: #{tpu_custom_call.1} parent=1 // pred_check_branch
      %297 = sbr.rel (0) target = $region37
    $region36: #{tpu_custom_call.1} parent=1 // pred_region
      %299 = vsyncadd [#allocation5], 0
      %s301 = sshll.u32 [#allocation9], 4
      %s302 = int_to_ptr.vmem [resolvable:$true] %s301
      %s303 = sshll.u32 %s3, 4
      %s304 = int_to_ptr.hbm [resolvable:$true] %s303
      %306 = dma.vmem_to_hbm [thread:$0]  %s302, 128, %s304, [#allocation5]
    $region37: #{tpu_custom_call.1} parent=1 // pred_fallthru
      _
    // Predicated region
    $region38: #{tpu_custom_call.1} parent=1 // pred_check
      _
    $region39: #{tpu_custom_call.1} parent=1 // pred_check_branch
      %308 = sbr.rel (0) target = $region41
    $region40: #{tpu_custom_call.1} parent=1 // pred_region
      %310 = dma.done [#allocation5], 128
    $region41: #{tpu_custom_call.1} parent=1 // pred_fallthru
      _
    %311 = vsyncpa [#allocation4], 1
    %312 = vsyncpa [#allocation7], 1
    %313 = vsyncpa [#allocation5], 1

</llo_original>
